<compile_context>
chip_gen: v6e
topology: v6e:2x2x1
jax: 0.10.0
libtpu: 0.0.40
codegen_flags: <defaults>
</compile_context>

<pallas_src>
import numpy as np
import jax
import jax.numpy as jnp
from jax import lax
from jax.experimental import pallas as pl
from jax.experimental.pallas import tpu as pltpu


# ----------------------------------------------------------------------------
# Pallas kernel: one invocation, batched (B, H) LSTM recurrence over L steps.
# ----------------------------------------------------------------------------
def _make_lstm_kernel(L: int, H: int):
    """Kernel closure for static sequence length L and hidden size H."""

    def kernel(xw_ref, whh_ref, h_out_ref):
        # xw_ref  : VMEM (L, B, 4H) f32  pre-gathered input proj (+bias, g-cols x2)
        # whh_ref : VMEM (H, 4H) bf16    stacked recurrent weights (g-cols x2)
        # h_out   : VMEM (B, H) f32      last hidden state per pile
        B = xw_ref.shape[1]
        u = whh_ref[...]                               # resident across steps

        h = jnp.zeros((B, H), jnp.float32)
        c = jnp.zeros((B, H), jnp.float32)

        # Fully unrolled recurrence (L is small & static).
        for t in range(L):
            # Dense (B, 4H) tile load + single (B,32)@(32,128) MXU push.
            z = xw_ref[t] + jnp.dot(h.astype(jnp.bfloat16), u,
                                    preferred_element_type=jnp.float32)
            # One whole-vreg sigmoid covers all gates; the g slice was
            # pre-scaled by 2, so tanh(z_g) == 2*sigmoid(2*z_g) - 1.
            s = jax.nn.sigmoid(z)
            i_g = s[:, 0 * H:1 * H]
            f_g = s[:, 1 * H:2 * H]
            g_g = 2.0 * s[:, 2 * H:3 * H] - 1.0
            o_g = s[:, 3 * H:4 * H]
            c = f_g * c + i_g * g_g
            h = o_g * jnp.tanh(c)

        h_out_ref[...] = h                              # one (B, H) store

    return kernel


def lstm_last_hidden_batched(card_ids, w_ih, w_hh, bias):
    """card_ids: (B, L) int32.  Returns (B, H) f32 last hidden states."""
    B, L = card_ids.shape
    D, fourH = w_ih.shape
    H = fourH // 4

    if L == 0:
        return jnp.zeros((B, H), jnp.float32)

    # g-gate columns pre-scaled by 2 (exact: power-of-two scale) so the kernel
    # uses a single full-width sigmoid for all gates.
    gate_scale = jnp.concatenate([jnp.ones((2 * H,), jnp.float32),
                                  jnp.full((H,), 2.0, jnp.float32),
                                  jnp.ones((H,), jnp.float32)])

    # Pre-gather the input projection with bias folded in (exact in f32):
    # one_hot(id) @ W_ih == W_ih[id].  Layout (L, B, 4H) so each recurrence
    # step reads one dense (B, 4H) tile.
    xw = (w_ih[card_ids.T] + bias.reshape(1, 1, fourH)) * gate_scale   # (L,B,4H)
    w_hh_s = (w_hh * gate_scale).astype(jnp.bfloat16)                  # (H,4H)

    # TODO(synk): for very large B (RL batches), add a leading grid axis of 2
    # with dimension_semantics=("parallel",) to use both v7x TensorCores.
    out = pl.pallas_call(
        _make_lstm_kernel(L, H),
        out_shape=jax.ShapeDtypeStruct((B, H), jnp.float32),
        grid=(1,),
        in_specs=[
            pl.BlockSpec((L, B, fourH), lambda i: (0, 0, 0)),
            pl.BlockSpec((H, fourH), lambda i: (0, 0)),
        ],
        out_specs=pl.BlockSpec((B, H), lambda i: (0, 0)),
    )(xw, w_hh_s)
    return out


# ----------------------------------------------------------------------------
# Thermometer ("hard") embedding — static slot table matching the PyTorch loop.
# ----------------------------------------------------------------------------
def _hard_emb_slot_table(num_colors, num_ranks):
    slot_c, slot_r, slot_k = [], [], []
    for c in range(num_colors):
        for r in range(num_ranks):
            cap = 3 if r == 0 else (1 if r == 5 else 2)   # verbatim module branch
            for k in range(cap):
                slot_c.append(c)
                slot_r.append(r)
                slot_k.append(k)
    return (np.array(slot_c, np.int32),
            np.array(slot_r, np.int32),
            np.array(slot_k, np.float32))


def _hard_emb_from_counts(counts, num_colors, num_ranks):
    """counts: (..., num_colors, num_ranks) -> (..., n_slots) thermometer."""
    slot_c, slot_r, slot_k = _hard_emb_slot_table(num_colors, num_ranks)
    sel = counts[..., slot_c, slot_r]
    return (jnp.asarray(slot_k) < sel).astype(jnp.float32)


# ----------------------------------------------------------------------------
# Forward passes.
# ----------------------------------------------------------------------------
def discard_pile_encoder_forward(card_ids, params, num_colors, num_ranks, emb_dim):
    """Module-faithful single-pile forward.  card_ids: int32 (L,)."""
    D = num_colors * num_ranks
    L = int(card_ids.shape[0])

    if L == 0:
        rnn_emb = jnp.zeros((emb_dim,), jnp.float32)
        counts = jnp.zeros((D,), jnp.float32)
    else:
        rnn_emb = lstm_last_hidden_batched(
            card_ids[None, :].astype(jnp.int32),
            params["w_ih"], params["w_hh"], params["bias"])[0]
        counts = jnp.zeros((D,), jnp.float32).at[card_ids].add(1.0)

    counts = counts.reshape(num_colors, num_ranks)
    hard_emb = _hard_emb_from_counts(counts, num_colors, num_ranks)
    return jnp.concatenate([rnn_emb, hard_emb])


def discard_pile_encoder_forward_batched(card_ids, params, num_colors, num_ranks,
                                         emb_dim):
    """Batched forward over B independent piles of equal length L.  (B, L) int32."""
    B, L = card_ids.shape
    D = num_colors * num_ranks
    rnn_emb = lstm_last_hidden_batched(card_ids.astype(jnp.int32),
                                       params["w_ih"], params["w_hh"],
                                       params["bias"])                     # (B, H)
    # TODO(synk): card ids are assumed valid in [0, D); padded/sentinel ids for
    # variable-length piles would need masking here and in the gather above.
    counts = jnp.sum(jax.nn.one_hot(card_ids, D, dtype=jnp.float32), axis=1)
    counts = counts.reshape(B, num_colors, num_ranks)
    hard = _hard_emb_from_counts(counts, num_colors, num_ranks)            # (B, S)
    return jnp.concatenate([rnn_emb, hard], axis=-1)


# ----------------------------------------------------------------------------
# Parameters (PyTorch nn.LSTM default init, gates stacked in i,f,g,o order).
# ----------------------------------------------------------------------------
def init_params(key, num_colors, num_ranks, emb_dim):
    D = num_colors * num_ranks
    H = emb_dim
    k = 1.0 / np.sqrt(H)
    k_ih, k_hh, k_bi, k_bh = jax.random.split(key, 4)
    w_ih = jax.random.uniform(k_ih, (D, 4 * H), jnp.float32, -k, k)
    w_hh = jax.random.uniform(k_hh, (H, 4 * H), jnp.float32, -k, k)
    b_ih = jax.random.uniform(k_bi, (1, 4 * H), jnp.float32, -k, k)
    b_hh = jax.random.uniform(k_bh, (1, 4 * H), jnp.float32, -k, k)
    return {"w_ih": w_ih, "w_hh": w_hh, "bias": b_ih + b_hh}


# ----------------------------------------------------------------------------
# Pure-JAX f32 reference (mirrors PyTorch LSTM semantics) for validation.
# ----------------------------------------------------------------------------
def _reference_forward(card_ids, params, num_colors, num_ranks, emb_dim):
    D = num_colors * num_ranks
    H = emb_dim
    x = jax.nn.one_hot(card_ids, D, dtype=jnp.float32)
    w_ih, w_hh, bias = params["w_ih"], params["w_hh"], params["bias"]
    hp = lax.Precision.HIGHEST

    def step(carry, x_t):
        h, c = carry
        z = (jnp.dot(x_t[None, :], w_ih, precision=hp)
             + jnp.dot(h, w_hh, precision=hp) + bias)
        i_g = jax.nn.sigmoid(z[:, 0 * H:1 * H])
        f_g = jax.nn.sigmoid(z[:, 1 * H:2 * H])
        g_g = jnp.tanh(z[:, 2 * H:3 * H])
        o_g = jax.nn.sigmoid(z[:, 3 * H:4 * H])
        c = f_g * c + i_g * g_g
        h = o_g * jnp.tanh(c)
        return (h, c), None

    (h, _), _ = lax.scan(step, (jnp.zeros((1, H)), jnp.zeros((1, H))), x)
    rnn_emb = h[0]
    counts = jnp.sum(x, axis=0).reshape(num_colors, num_ranks)
    hard = _hard_emb_from_counts(counts, num_colors, num_ranks)
    return jnp.concatenate([rnn_emb, hard])


if __name__ == "__main__":
    NUM_COLORS, NUM_RANKS, EMB_DIM = 5, 5, 32   # standard Hanabi deck, H=32
    B, L = 8, 8                                  # 8 game states, 8 cards each

    key = jax.random.PRNGKey(0)
    k_par, k_ids = jax.random.split(key)
    params = init_params(k_par, NUM_COLORS, NUM_RANKS, EMB_DIM)
    card_ids = jax.random.randint(k_ids, (B, L), 0, NUM_COLORS * NUM_RANKS,
                                  dtype=jnp.int32)

    # Batched kernel (primary entry point — one kernel call for all piles).
    out_b = jax.block_until_ready(
        discard_pile_encoder_forward_batched(card_ids, params,
                                             NUM_COLORS, NUM_RANKS, EMB_DIM))

    slot_c, slot_r, slot_k = _hard_emb_slot_table(NUM_COLORS, NUM_RANKS)
    expected_dim = EMB_DIM + slot_k.shape[0]
    assert out_b.shape == (B, expected_dim), out_b.shape

    refs = np.stack([
        np.asarray(jax.block_until_ready(
            _reference_forward(card_ids[b], params,
                               NUM_COLORS, NUM_RANKS, EMB_DIM)))
        for b in range(B)])

    # Kernel uses bf16 MXU operands with f32 accumulation -> loose-ish tolerance
    # vs. the HIGHEST-precision f32 reference; thermometer part must be exact.
    np.testing.assert_allclose(np.asarray(out_b), refs, atol=2e-2, rtol=2e-2)
    np.testing.assert_array_equal(np.asarray(out_b)[:, EMB_DIM:],
                                  refs[:, EMB_DIM:])

    # Module-faithful single-pile path (B=1 through the same kernel).
    out_1 = jax.block_until_ready(
        discard_pile_encoder_forward(card_ids[0], params,
                                     NUM_COLORS, NUM_RANKS, EMB_DIM))
    assert out_1.shape == (expected_dim,), out_1.shape
    np.testing.assert_allclose(np.asarray(out_1), refs[0], atol=2e-2, rtol=2e-2)

    print("KERNEL_OK")
</pallas_src>

<mosaic_0001>
module attributes {stable_mosaic.version = 11 : i64} {
  func.func @kernel(%arg0: i32, %arg1: memref<8x8x128xf32, #tpu.memory_space<vmem>>, %arg2: memref<32x128xbf16, #tpu.memory_space<vmem>>, %arg3: memref<8x32xf32, #tpu.memory_space<vmem>>) attributes {dimension_semantics = [#tpu.dimension_semantics<arbitrary>], iteration_bounds = array<i64: 1>, scalar_prefetch = 0 : i64, scratch_operands = 0 : i64, tpu.core_type = #tpu.core_type<tc>, window_params = [{pipeline_mode = #tpu.pipeline_mode<synchronous>, transform_indices = @transform_0, window_bounds = array<i64: 8, 8, 128>}, {pipeline_mode = #tpu.pipeline_mode<synchronous>, transform_indices = @transform_1, window_bounds = array<i64: 32, 128>}, {pipeline_mode = #tpu.pipeline_mode<synchronous>, transform_indices = @transform_2, window_bounds = array<i64: 8, 32>}]} {
    %c0 = arith.constant 0 : index
    %c0_0 = arith.constant 0 : index
    %0 = vector.load %arg2[%c0, %c0_0] : memref<32x128xbf16, #tpu.memory_space<vmem>>, vector<32x128xbf16>
    %cst = arith.constant 0.000000e+00 : f32
    %1 = vector.broadcast %cst : f32 to vector<8x32xf32>
    %cst_1 = arith.constant 0.000000e+00 : f32
    %2 = vector.broadcast %cst_1 : f32 to vector<8x32xf32>
    %c0_2 = arith.constant 0 : index
    %c0_3 = arith.constant 0 : index
    %c0_4 = arith.constant 0 : index
    %3 = vector.load %arg1[%c0_2, %c0_3, %c0_4] : memref<8x8x128xf32, #tpu.memory_space<vmem>>, vector<1x8x128xf32>
    %4 = vector.shape_cast %3 : vector<1x8x128xf32> to vector<8x128xf32>
    %5 = arith.truncf %1 : vector<8x32xf32> to vector<8x32xbf16>
    %cst_5 = arith.constant dense<0.000000e+00> : vector<8x128xf32>
    %6 = tpu.matmul %5, %0, %cst_5 {dimension_numbers = #tpu.dot_dimension_numbers<[1], [0], [0], [1], [0, 0, 1, 1], [], []>} : vector<8x32xbf16>, vector<32x128xbf16>, vector<8x128xf32> -> vector<8x128xf32>
    %7 = arith.addf %4, %6 : vector<8x128xf32>
    %8 = arith.negf %7 : vector<8x128xf32>
    %9 = math.exp %8 : vector<8x128xf32>
    %cst_6 = arith.constant 1.000000e+00 : f32
    %10 = vector.broadcast %cst_6 : f32 to vector<8x128xf32>
    %11 = arith.addf %10, %9 : vector<8x128xf32>
    %12 = arith.divf %10, %11 : vector<8x128xf32>
    %13 = vector.extract_strided_slice %12 {offsets = [0, 0], sizes = [8, 32], strides = [1, 1]} : vector<8x128xf32> to vector<8x32xf32>
    %14 = vector.extract_strided_slice %12 {offsets = [0, 32], sizes = [8, 32], strides = [1, 1]} : vector<8x128xf32> to vector<8x32xf32>
    %15 = vector.extract_strided_slice %12 {offsets = [0, 64], sizes = [8, 32], strides = [1, 1]} : vector<8x128xf32> to vector<8x32xf32>
    %cst_7 = arith.constant 2.000000e+00 : f32
    %16 = vector.broadcast %cst_7 : f32 to vector<8x32xf32>
    %17 = arith.mulf %16, %15 : vector<8x32xf32>
    %cst_8 = arith.constant 1.000000e+00 : f32
    %18 = vector.broadcast %cst_8 : f32 to vector<8x32xf32>
    %19 = arith.subf %17, %18 : vector<8x32xf32>
    %20 = vector.extract_strided_slice %12 {offsets = [0, 96], sizes = [8, 32], strides = [1, 1]} : vector<8x128xf32> to vector<8x32xf32>
    %21 = arith.mulf %14, %2 : vector<8x32xf32>
    %22 = arith.mulf %13, %19 : vector<8x32xf32>
    %23 = arith.addf %21, %22 : vector<8x32xf32>
    %24 = math.tanh %23 : vector<8x32xf32>
    %25 = arith.mulf %20, %24 : vector<8x32xf32>
    %c1 = arith.constant 1 : index
    %c0_9 = arith.constant 0 : index
    %c0_10 = arith.constant 0 : index
    %26 = vector.load %arg1[%c1, %c0_9, %c0_10] : memref<8x8x128xf32, #tpu.memory_space<vmem>>, vector<1x8x128xf32>
    %27 = vector.shape_cast %26 : vector<1x8x128xf32> to vector<8x128xf32>
    %28 = arith.truncf %25 : vector<8x32xf32> to vector<8x32xbf16>
    %cst_11 = arith.constant dense<0.000000e+00> : vector<8x128xf32>
    %29 = tpu.matmul %28, %0, %cst_11 {dimension_numbers = #tpu.dot_dimension_numbers<[1], [0], [0], [1], [0, 0, 1, 1], [], []>} : vector<8x32xbf16>, vector<32x128xbf16>, vector<8x128xf32> -> vector<8x128xf32>
    %30 = arith.addf %27, %29 : vector<8x128xf32>
    %31 = arith.negf %30 : vector<8x128xf32>
    %32 = math.exp %31 : vector<8x128xf32>
    %cst_12 = arith.constant 1.000000e+00 : f32
    %33 = vector.broadcast %cst_12 : f32 to vector<8x128xf32>
    %34 = arith.addf %33, %32 : vector<8x128xf32>
    %35 = arith.divf %33, %34 : vector<8x128xf32>
    %36 = vector.extract_strided_slice %35 {offsets = [0, 0], sizes = [8, 32], strides = [1, 1]} : vector<8x128xf32> to vector<8x32xf32>
    %37 = vector.extract_strided_slice %35 {offsets = [0, 32], sizes = [8, 32], strides = [1, 1]} : vector<8x128xf32> to vector<8x32xf32>
    %38 = vector.extract_strided_slice %35 {offsets = [0, 64], sizes = [8, 32], strides = [1, 1]} : vector<8x128xf32> to vector<8x32xf32>
    %cst_13 = arith.constant 2.000000e+00 : f32
    %39 = vector.broadcast %cst_13 : f32 to vector<8x32xf32>
    %40 = arith.mulf %39, %38 : vector<8x32xf32>
    %cst_14 = arith.constant 1.000000e+00 : f32
    %41 = vector.broadcast %cst_14 : f32 to vector<8x32xf32>
    %42 = arith.subf %40, %41 : vector<8x32xf32>
    %43 = vector.extract_strided_slice %35 {offsets = [0, 96], sizes = [8, 32], strides = [1, 1]} : vector<8x128xf32> to vector<8x32xf32>
    %44 = arith.mulf %37, %23 : vector<8x32xf32>
    %45 = arith.mulf %36, %42 : vector<8x32xf32>
    %46 = arith.addf %44, %45 : vector<8x32xf32>
    %47 = math.tanh %46 : vector<8x32xf32>
    %48 = arith.mulf %43, %47 : vector<8x32xf32>
    %c2 = arith.constant 2 : index
    %c0_15 = arith.constant 0 : index
    %c0_16 = arith.constant 0 : index
    %49 = vector.load %arg1[%c2, %c0_15, %c0_16] : memref<8x8x128xf32, #tpu.memory_space<vmem>>, vector<1x8x128xf32>
    %50 = vector.shape_cast %49 : vector<1x8x128xf32> to vector<8x128xf32>
    %51 = arith.truncf %48 : vector<8x32xf32> to vector<8x32xbf16>
    %cst_17 = arith.constant dense<0.000000e+00> : vector<8x128xf32>
    %52 = tpu.matmul %51, %0, %cst_17 {dimension_numbers = #tpu.dot_dimension_numbers<[1], [0], [0], [1], [0, 0, 1, 1], [], []>} : vector<8x32xbf16>, vector<32x128xbf16>, vector<8x128xf32> -> vector<8x128xf32>
    %53 = arith.addf %50, %52 : vector<8x128xf32>
    %54 = arith.negf %53 : vector<8x128xf32>
    %55 = math.exp %54 : vector<8x128xf32>
    %cst_18 = arith.constant 1.000000e+00 : f32
    %56 = vector.broadcast %cst_18 : f32 to vector<8x128xf32>
    %57 = arith.addf %56, %55 : vector<8x128xf32>
    %58 = arith.divf %56, %57 : vector<8x128xf32>
    %59 = vector.extract_strided_slice %58 {offsets = [0, 0], sizes = [8, 32], strides = [1, 1]} : vector<8x128xf32> to vector<8x32xf32>
    %60 = vector.extract_strided_slice %58 {offsets = [0, 32], sizes = [8, 32], strides = [1, 1]} : vector<8x128xf32> to vector<8x32xf32>
    %61 = vector.extract_strided_slice %58 {offsets = [0, 64], sizes = [8, 32], strides = [1, 1]} : vector<8x128xf32> to vector<8x32xf32>
    %cst_19 = arith.constant 2.000000e+00 : f32
    %62 = vector.broadcast %cst_19 : f32 to vector<8x32xf32>
    %63 = arith.mulf %62, %61 : vector<8x32xf32>
    %cst_20 = arith.constant 1.000000e+00 : f32
    %64 = vector.broadcast %cst_20 : f32 to vector<8x32xf32>
    %65 = arith.subf %63, %64 : vector<8x32xf32>
    %66 = vector.extract_strided_slice %58 {offsets = [0, 96], sizes = [8, 32], strides = [1, 1]} : vector<8x128xf32> to vector<8x32xf32>
    %67 = arith.mulf %60, %46 : vector<8x32xf32>
    %68 = arith.mulf %59, %65 : vector<8x32xf32>
    %69 = arith.addf %67, %68 : vector<8x32xf32>
    %70 = math.tanh %69 : vector<8x32xf32>
    %71 = arith.mulf %66, %70 : vector<8x32xf32>
    %c3 = arith.constant 3 : index
    %c0_21 = arith.constant 0 : index
    %c0_22 = arith.constant 0 : index
    %72 = vector.load %arg1[%c3, %c0_21, %c0_22] : memref<8x8x128xf32, #tpu.memory_space<vmem>>, vector<1x8x128xf32>
    %73 = vector.shape_cast %72 : vector<1x8x128xf32> to vector<8x128xf32>
    %74 = arith.truncf %71 : vector<8x32xf32> to vector<8x32xbf16>
    %cst_23 = arith.constant dense<0.000000e+00> : vector<8x128xf32>
    %75 = tpu.matmul %74, %0, %cst_23 {dimension_numbers = #tpu.dot_dimension_numbers<[1], [0], [0], [1], [0, 0, 1, 1], [], []>} : vector<8x32xbf16>, vector<32x128xbf16>, vector<8x128xf32> -> vector<8x128xf32>
    %76 = arith.addf %73, %75 : vector<8x128xf32>
    %77 = arith.negf %76 : vector<8x128xf32>
    %78 = math.exp %77 : vector<8x128xf32>
    %cst_24 = arith.constant 1.000000e+00 : f32
    %79 = vector.broadcast %cst_24 : f32 to vector<8x128xf32>
    %80 = arith.addf %79, %78 : vector<8x128xf32>
    %81 = arith.divf %79, %80 : vector<8x128xf32>
    %82 = vector.extract_strided_slice %81 {offsets = [0, 0], sizes = [8, 32], strides = [1, 1]} : vector<8x128xf32> to vector<8x32xf32>
    %83 = vector.extract_strided_slice %81 {offsets = [0, 32], sizes = [8, 32], strides = [1, 1]} : vector<8x128xf32> to vector<8x32xf32>
    %84 = vector.extract_strided_slice %81 {offsets = [0, 64], sizes = [8, 32], strides = [1, 1]} : vector<8x128xf32> to vector<8x32xf32>
    %cst_25 = arith.constant 2.000000e+00 : f32
    %85 = vector.broadcast %cst_25 : f32 to vector<8x32xf32>
    %86 = arith.mulf %85, %84 : vector<8x32xf32>
    %cst_26 = arith.constant 1.000000e+00 : f32
    %87 = vector.broadcast %cst_26 : f32 to vector<8x32xf32>
    %88 = arith.subf %86, %87 : vector<8x32xf32>
    %89 = vector.extract_strided_slice %81 {offsets = [0, 96], sizes = [8, 32], strides = [1, 1]} : vector<8x128xf32> to vector<8x32xf32>
    %90 = arith.mulf %83, %69 : vector<8x32xf32>
    %91 = arith.mulf %82, %88 : vector<8x32xf32>
    %92 = arith.addf %90, %91 : vector<8x32xf32>
    %93 = math.tanh %92 : vector<8x32xf32>
    %94 = arith.mulf %89, %93 : vector<8x32xf32>
    %c4 = arith.constant 4 : index
    %c0_27 = arith.constant 0 : index
    %c0_28 = arith.constant 0 : index
    %95 = vector.load %arg1[%c4, %c0_27, %c0_28] : memref<8x8x128xf32, #tpu.memory_space<vmem>>, vector<1x8x128xf32>
    %96 = vector.shape_cast %95 : vector<1x8x128xf32> to vector<8x128xf32>
    %97 = arith.truncf %94 : vector<8x32xf32> to vector<8x32xbf16>
    %cst_29 = arith.constant dense<0.000000e+00> : vector<8x128xf32>
    %98 = tpu.matmul %97, %0, %cst_29 {dimension_numbers = #tpu.dot_dimension_numbers<[1], [0], [0], [1], [0, 0, 1, 1], [], []>} : vector<8x32xbf16>, vector<32x128xbf16>, vector<8x128xf32> -> vector<8x128xf32>
    %99 = arith.addf %96, %98 : vector<8x128xf32>
    %100 = arith.negf %99 : vector<8x128xf32>
    %101 = math.exp %100 : vector<8x128xf32>
    %cst_30 = arith.constant 1.000000e+00 : f32
    %102 = vector.broadcast %cst_30 : f32 to vector<8x128xf32>
    %103 = arith.addf %102, %101 : vector<8x128xf32>
    %104 = arith.divf %102, %103 : vector<8x128xf32>
    %105 = vector.extract_strided_slice %104 {offsets = [0, 0], sizes = [8, 32], strides = [1, 1]} : vector<8x128xf32> to vector<8x32xf32>
    %106 = vector.extract_strided_slice %104 {offsets = [0, 32], sizes = [8, 32], strides = [1, 1]} : vector<8x128xf32> to vector<8x32xf32>
    %107 = vector.extract_strided_slice %104 {offsets = [0, 64], sizes = [8, 32], strides = [1, 1]} : vector<8x128xf32> to vector<8x32xf32>
    %cst_31 = arith.constant 2.000000e+00 : f32
    %108 = vector.broadcast %cst_31 : f32 to vector<8x32xf32>
    %109 = arith.mulf %108, %107 : vector<8x32xf32>
    %cst_32 = arith.constant 1.000000e+00 : f32
    %110 = vector.broadcast %cst_32 : f32 to vector<8x32xf32>
    %111 = arith.subf %109, %110 : vector<8x32xf32>
    %112 = vector.extract_strided_slice %104 {offsets = [0, 96], sizes = [8, 32], strides = [1, 1]} : vector<8x128xf32> to vector<8x32xf32>
    %113 = arith.mulf %106, %92 : vector<8x32xf32>
    %114 = arith.mulf %105, %111 : vector<8x32xf32>
    %115 = arith.addf %113, %114 : vector<8x32xf32>
    %116 = math.tanh %115 : vector<8x32xf32>
    %117 = arith.mulf %112, %116 : vector<8x32xf32>
    %c5 = arith.constant 5 : index
    %c0_33 = arith.constant 0 : index
    %c0_34 = arith.constant 0 : index
    %118 = vector.load %arg1[%c5, %c0_33, %c0_34] : memref<8x8x128xf32, #tpu.memory_space<vmem>>, vector<1x8x128xf32>
    %119 = vector.shape_cast %118 : vector<1x8x128xf32> to vector<8x128xf32>
    %120 = arith.truncf %117 : vector<8x32xf32> to vector<8x32xbf16>
    %cst_35 = arith.constant dense<0.000000e+00> : vector<8x128xf32>
    %121 = tpu.matmul %120, %0, %cst_35 {dimension_numbers = #tpu.dot_dimension_numbers<[1], [0], [0], [1], [0, 0, 1, 1], [], []>} : vector<8x32xbf16>, vector<32x128xbf16>, vector<8x128xf32> -> vector<8x128xf32>
    %122 = arith.addf %119, %121 : vector<8x128xf32>
    %123 = arith.negf %122 : vector<8x128xf32>
    %124 = math.exp %123 : vector<8x128xf32>
    %cst_36 = arith.constant 1.000000e+00 : f32
    %125 = vector.broadcast %cst_36 : f32 to vector<8x128xf32>
    %126 = arith.addf %125, %124 : vector<8x128xf32>
    %127 = arith.divf %125, %126 : vector<8x128xf32>
    %128 = vector.extract_strided_slice %127 {offsets = [0, 0], sizes = [8, 32], strides = [1, 1]} : vector<8x128xf32> to vector<8x32xf32>
    %129 = vector.extract_strided_slice %127 {offsets = [0, 32], sizes = [8, 32], strides = [1, 1]} : vector<8x128xf32> to vector<8x32xf32>
    %130 = vector.extract_strided_slice %127 {offsets = [0, 64], sizes = [8, 32], strides = [1, 1]} : vector<8x128xf32> to vector<8x32xf32>
    %cst_37 = arith.constant 2.000000e+00 : f32
    %131 = vector.broadcast %cst_37 : f32 to vector<8x32xf32>
    %132 = arith.mulf %131, %130 : vector<8x32xf32>
    %cst_38 = arith.constant 1.000000e+00 : f32
    %133 = vector.broadcast %cst_38 : f32 to vector<8x32xf32>
    %134 = arith.subf %132, %133 : vector<8x32xf32>
    %135 = vector.extract_strided_slice %127 {offsets = [0, 96], sizes = [8, 32], strides = [1, 1]} : vector<8x128xf32> to vector<8x32xf32>
    %136 = arith.mulf %129, %115 : vector<8x32xf32>
    %137 = arith.mulf %128, %134 : vector<8x32xf32>
    %138 = arith.addf %136, %137 : vector<8x32xf32>
    %139 = math.tanh %138 : vector<8x32xf32>
    %140 = arith.mulf %135, %139 : vector<8x32xf32>
    %c6 = arith.constant 6 : index
    %c0_39 = arith.constant 0 : index
    %c0_40 = arith.constant 0 : index
    %141 = vector.load %arg1[%c6, %c0_39, %c0_40] : memref<8x8x128xf32, #tpu.memory_space<vmem>>, vector<1x8x128xf32>
    %142 = vector.shape_cast %141 : vector<1x8x128xf32> to vector<8x128xf32>
    %143 = arith.truncf %140 : vector<8x32xf32> to vector<8x32xbf16>
    %cst_41 = arith.constant dense<0.000000e+00> : vector<8x128xf32>
    %144 = tpu.matmul %143, %0, %cst_41 {dimension_numbers = #tpu.dot_dimension_numbers<[1], [0], [0], [1], [0, 0, 1, 1], [], []>} : vector<8x32xbf16>, vector<32x128xbf16>, vector<8x128xf32> -> vector<8x128xf32>
    %145 = arith.addf %142, %144 : vector<8x128xf32>
    %146 = arith.negf %145 : vector<8x128xf32>
    %147 = math.exp %146 : vector<8x128xf32>
    %cst_42 = arith.constant 1.000000e+00 : f32
    %148 = vector.broadcast %cst_42 : f32 to vector<8x128xf32>
    %149 = arith.addf %148, %147 : vector<8x128xf32>
    %150 = arith.divf %148, %149 : vector<8x128xf32>
    %151 = vector.extract_strided_slice %150 {offsets = [0, 0], sizes = [8, 32], strides = [1, 1]} : vector<8x128xf32> to vector<8x32xf32>
    %152 = vector.extract_strided_slice %150 {offsets = [0, 32], sizes = [8, 32], strides = [1, 1]} : vector<8x128xf32> to vector<8x32xf32>
    %153 = vector.extract_strided_slice %150 {offsets = [0, 64], sizes = [8, 32], strides = [1, 1]} : vector<8x128xf32> to vector<8x32xf32>
    %cst_43 = arith.constant 2.000000e+00 : f32
    %154 = vector.broadcast %cst_43 : f32 to vector<8x32xf32>
    %155 = arith.mulf %154, %153 : vector<8x32xf32>
    %cst_44 = arith.constant 1.000000e+00 : f32
    %156 = vector.broadcast %cst_44 : f32 to vector<8x32xf32>
    %157 = arith.subf %155, %156 : vector<8x32xf32>
    %158 = vector.extract_strided_slice %150 {offsets = [0, 96], sizes = [8, 32], strides = [1, 1]} : vector<8x128xf32> to vector<8x32xf32>
    %159 = arith.mulf %152, %138 : vector<8x32xf32>
    %160 = arith.mulf %151, %157 : vector<8x32xf32>
    %161 = arith.addf %159, %160 : vector<8x32xf32>
    %162 = math.tanh %161 : vector<8x32xf32>
    %163 = arith.mulf %158, %162 : vector<8x32xf32>
    %c7 = arith.constant 7 : index
    %c0_45 = arith.constant 0 : index
    %c0_46 = arith.constant 0 : index
    %164 = vector.load %arg1[%c7, %c0_45, %c0_46] : memref<8x8x128xf32, #tpu.memory_space<vmem>>, vector<1x8x128xf32>
    %165 = vector.shape_cast %164 : vector<1x8x128xf32> to vector<8x128xf32>
    %166 = arith.truncf %163 : vector<8x32xf32> to vector<8x32xbf16>
    %cst_47 = arith.constant dense<0.000000e+00> : vector<8x128xf32>
    %167 = tpu.matmul %166, %0, %cst_47 {dimension_numbers = #tpu.dot_dimension_numbers<[1], [0], [0], [1], [0, 0, 1, 1], [], []>} : vector<8x32xbf16>, vector<32x128xbf16>, vector<8x128xf32> -> vector<8x128xf32>
    %168 = arith.addf %165, %167 : vector<8x128xf32>
    %169 = arith.negf %168 : vector<8x128xf32>
    %170 = math.exp %169 : vector<8x128xf32>
    %cst_48 = arith.constant 1.000000e+00 : f32
    %171 = vector.broadcast %cst_48 : f32 to vector<8x128xf32>
    %172 = arith.addf %171, %170 : vector<8x128xf32>
    %173 = arith.divf %171, %172 : vector<8x128xf32>
    %174 = vector.extract_strided_slice %173 {offsets = [0, 0], sizes = [8, 32], strides = [1, 1]} : vector<8x128xf32> to vector<8x32xf32>
    %175 = vector.extract_strided_slice %173 {offsets = [0, 32], sizes = [8, 32], strides = [1, 1]} : vector<8x128xf32> to vector<8x32xf32>
    %176 = vector.extract_strided_slice %173 {offsets = [0, 64], sizes = [8, 32], strides = [1, 1]} : vector<8x128xf32> to vector<8x32xf32>
    %cst_49 = arith.constant 2.000000e+00 : f32
    %177 = vector.broadcast %cst_49 : f32 to vector<8x32xf32>
    %178 = arith.mulf %177, %176 : vector<8x32xf32>
    %cst_50 = arith.constant 1.000000e+00 : f32
    %179 = vector.broadcast %cst_50 : f32 to vector<8x32xf32>
    %180 = arith.subf %178, %179 : vector<8x32xf32>
    %181 = vector.extract_strided_slice %173 {offsets = [0, 96], sizes = [8, 32], strides = [1, 1]} : vector<8x128xf32> to vector<8x32xf32>
    %182 = arith.mulf %175, %161 : vector<8x32xf32>
    %183 = arith.mulf %174, %180 : vector<8x32xf32>
    %184 = arith.addf %182, %183 : vector<8x32xf32>
    %185 = math.tanh %184 : vector<8x32xf32>
    %186 = arith.mulf %181, %185 : vector<8x32xf32>
    %c0_51 = arith.constant 0 : index
    %c0_52 = arith.constant 0 : index
    %187 = vector.load %arg3[%c0_51, %c0_52] : memref<8x32xf32, #tpu.memory_space<vmem>>, vector<8x32xf32>
    tpu.vector_store %arg3[%c0_51, %c0_52], %186 {strides = array<i32>} : memref<8x32xf32, #tpu.memory_space<vmem>>, vector<8x32xf32>,
    return
  }
  func.func @transform_0(%arg0: i32) -> (i32, i32, i32) {
    %c0_i32 = arith.constant 0 : i32
    %c0_i32_0 = arith.constant 0 : i32
    %c0_i32_1 = arith.constant 0 : i32
    %c0_i32_2 = arith.constant 0 : i32
    return %c0_i32, %c0_i32_0, %c0_i32_1 : i32, i32, i32
  }
  func.func @transform_1(%arg0: i32) -> (i32, i32) {
    %c0_i32 = arith.constant 0 : i32
    %c0_i32_0 = arith.constant 0 : i32
    %c0_i32_1 = arith.constant 0 : i32
    return %c0_i32, %c0_i32_0 : i32, i32
  }
  func.func @transform_2(%arg0: i32) -> (i32, i32) {
    %c0_i32 = arith.constant 0 : i32
    %c0_i32_0 = arith.constant 0 : i32
    %c0_i32_1 = arith.constant 0 : i32
    return %c0_i32, %c0_i32_0 : i32, i32
  }
}

</mosaic_0001>

<llo_original>
// kernel: tpu_custom_call.1
$region0: #{tpu_custom_call.1}
  #allocation0 [shape = 'u32[]', space=smem, size = 0x4, offset = 0x4, fixed_abs, tag = 'smem constant byte address 0x4 - core index']
  #allocation1 [shape = 'u32[144,128]{1,0:T(1,128)}', space=vmem, size = 0x12000, scoped, tag = 'internal scratch']
  %s0 = inlined_call_operand.hbm [shape: f32[8,8,128], index: 0, kind: input, shape index: {}]
  %s1 = inlined_call_operand.hbm [shape: bf16[32,128], index: 1, kind: input, shape index: {}]
  %s2 = inlined_call_operand.hbm [shape: f32[8,32], index: 2, kind: output, shape index: {}]
  %s3 = sld [smem:[#allocation0]]
  $region26: #{tpu_custom_call.1} parent=0
    _
  %s5 = ssub.s32 1, %s3
  %s6 = scalar_select 0, %s5, %s3
  $region1: #{tpu_custom_call.1} parent=0
    #allocation2 [shape = 'u8[32768]{0}', space=vmem, size = 0x8000, scoped, tag = 'input window, operand 0, single buffered']
    #allocation3 [shape = 's32[1]{0}', space=sflag, size = 0x4, scoped, tag = 'scoped memory for tpu_custom_call.1']
    #allocation4 [shape = 's32[1]{0}', space=sflag, size = 0x4, scoped, tag = 'scoped memory for tpu_custom_call.1']
    #allocation5 [shape = 'u8[8192]{0}', space=vmem, size = 0x2000, scoped, tag = 'input window, operand 1, single buffered']
    #allocation6 [shape = 's32[1]{0}', space=sflag, size = 0x4, scoped, tag = 'scoped memory for tpu_custom_call.1']
    #allocation7 [shape = 'u8[4096]{0}', space=vmem, size = 0x1000, scoped, tag = 'output window, operand 0, single buffered']
    %7 = vsyncpa [#allocation3], 0
    %8 = vsyncpa [#allocation6], 0
    %9 = vsyncpa [#allocation4], 0
    // Predicated region
    $region2: #{tpu_custom_call.1} parent=1 // pred_check
      _
    $region3: #{tpu_custom_call.1} parent=1 // pred_check_branch
      %11 = sbr.rel (0) target = $region5
    $region4: #{tpu_custom_call.1} parent=1 // pred_region
      %s13 = ssub.s32 1024, 1024
      %14 = vsyncadd [#allocation3], %s13
      %s15 = sshll.u32 [#allocation2], 4
      %s16 = int_to_ptr.vmem [resolvable:$true] %s15
      %21 = dma.hbm_to_vmem [thread:$0]  %s0, 1024, %s16, [#allocation3], 128, 128, 8
    $region5: #{tpu_custom_call.1} parent=1 // pred_fallthru
      _
    // Predicated region
    $region6: #{tpu_custom_call.1} parent=1 // pred_check
      _
    $region7: #{tpu_custom_call.1} parent=1 // pred_check_branch
      %23 = sbr.rel (0) target = $region9
    $region8: #{tpu_custom_call.1} parent=1 // pred_region
      %s25 = ssub.s32 256, 256
      %26 = vsyncadd [#allocation6], %s25
      %s27 = sshll.u32 [#allocation5], 4
      %s28 = int_to_ptr.vmem [resolvable:$true] %s27
      %33 = dma.hbm_to_vmem [thread:$0]  %s1, 256, %s28, [#allocation6], 64, 64, 4
    $region9: #{tpu_custom_call.1} parent=1 // pred_fallthru
      _
    // Predicated region
    $region10: #{tpu_custom_call.1} parent=1 // pred_check
      _
    $region11: #{tpu_custom_call.1} parent=1 // pred_check_branch
      %35 = sbr.rel (0) target = $region13
    $region12: #{tpu_custom_call.1} parent=1 // pred_region
      %36 = dma.done [#allocation3], 1024
    $region13: #{tpu_custom_call.1} parent=1 // pred_fallthru
      _
    // Predicated region
    $region14: #{tpu_custom_call.1} parent=1 // pred_check
      _
    $region15: #{tpu_custom_call.1} parent=1 // pred_check_branch
      %38 = sbr.rel (0) target = $region17
    $region16: #{tpu_custom_call.1} parent=1 // pred_region
      %39 = dma.done [#allocation6], 256
    $region17: #{tpu_custom_call.1} parent=1 // pred_fallthru
      _
    %v41 = vld [vmem:[#allocation5] sm:$0xf]
    %v42 = vld [vmem:[#allocation5 + $0x4] sm:$0xf]
    %v43 = vld [vmem:[#allocation5 + $0x8] sm:$0xf]
    %v44 = vld [vmem:[#allocation5 + $0xc] sm:$0xf]
    %v45 = vld [vmem:[#allocation2] sm:$0xff]
    %v50 = vunpack.c.l.b16 %v41
    %v51 = vunpack.c.l.b16 %v42
    %v52 = vunpack.c.l.b16 %v43
    %v53 = vunpack.c.l.b16 %v44
    %v54 = vpack.c.b16 %v51, %v50
    %v55 = vpack.c.b16 %v53, %v52
    %vm58 = vcmask 261120
    %v60 = vsel %vm58, 0, 0
    %62 = vmatprep.subr.bf16.mxu0 0
    %63 = vmatpush1.bf16.msra.mxu0 0
    %64 = vmatprep.subr.bf16.mxu0 0
    %65 = vmatpush1.bf16.msra.mxu0 0
    %66 = vmatprep.subr.bf16.mxu0 0
    %67 = vmatpush1.bf16.msra.mxu0 0
    %68 = vmatprep.subr.bf16.mxu0 0
    %69 = vmatpush1.bf16.msra.mxu0 0
    %70 = vmatprep.subr.bf16.mxu0 0
    %71 = vmatpush1.bf16.msra.mxu0 0
    %72 = vmatprep.subr.bf16.mxu0 0
    %73 = vmatpush1.bf16.msra.mxu0 0
    %74 = vmatprep.subr.bf16.mxu0 0
    %75 = vmatpush1.bf16.msra.mxu0 %v55
    %76 = vmatprep.subr.bf16.mxu0 0
    %77 = vmatpush1.bf16.msra.mxu0 %v54
    %78 = vmatprep.subr.bf16.mxu0 0
    %79 = vmatpush2.bf16.msra.mxu0 0
    %80 = vmatprep.subr.bf16.mxu0 0
    %81 = vmatpush2.bf16.msra.mxu0 0
    %82 = vmatprep.subr.bf16.mxu0 0
    %83 = vmatpush2.bf16.msra.mxu0 0
    %84 = vmatprep.subr.bf16.mxu0 0
    %85 = vmatpush2.bf16.msra.mxu0 0
    %86 = vmatprep.subr.bf16.mxu0 0
    %87 = vmatpush2.bf16.msra.mxu0 0
    %88 = vmatprep.subr.bf16.mxu0 0
    %89 = vmatpush2.bf16.msra.mxu0 0
    %90 = vmatprep.subr.bf16.mxu0 0
    %91 = vmatpush2.bf16.msra.mxu0 0
    %92 = vmatprep.subr.bf16.mxu0 0
    %93 = vmatpush2.bf16.msra.mxu0 0
    %94 = vmatprep.mubr.bf16.mxu0 0
    %95 = vmatmul.mubr.bf16.gmra.mxu0 %v60
    %v96 = vpop.f32.mrf.mxu0
    %v97 = vadd.f32 0.0, %v96
    %v98 = vpop.f32.mrf.mxu0
    %v99 = vpop.f32.mrf.mxu0
    %v100 = vpop.f32.mrf.mxu0
    %101 = vdwg.mxu0
    %v102 = vadd.f32 %v45, %v97
    %v103 = vxor.u32 %v102, 2147483648
    %v104 = vmul.f32 %v103, 1.442695
    %v105 = vpow.pop %v104
    %v106 = vadd.f32 %v105, 1.0
    %v107 = vrcp.pop %v106
    %v108 = vmul.f32 1.0, %v107
    %v109 = vmul.f32 %v108, 2.0
    %v110 = vsub.f32 %v109, 1.0
    %v111 = vmul.f32 %v108, 0.0
    %113 = vrot.lane.b32.xlu0 %v110, 64
    %v114 = vpop.permute.xlu0 %113
    %v116 = vmul.f32 %v108, %v114
    %118 = vrot.lane.b32.xlu0 %v116, 32
    %v119 = vpop.permute.xlu0 %118
    %v121 = vadd.f32 %v111, %v119
    %v122 = vtanh.pop %v121
    %124 = vrot.lane.b32.xlu0 %v122, 64
    %v125 = vpop.permute.xlu0 %124
    %v127 = vmul.f32 %v108, %v125
    %s128 = scalar_lea.vmem [#allocation2], 8
    %v129 = vld [vmem:[%s128] sm:$0xff]
    %v130 = vpack.c.bf16 %v127, %v127
    %132 = vrot.lane.b32.xlu0 %v130, 32
    %v133 = vpop.permute.xlu0 %132
    %v135 = vsel %vm58, %v133, 0
    %137 = vmatprep.subr.bf16.mxu0 0
    %138 = vmatpush1.bf16.msra.mxu0 0
    %139 = vmatprep.subr.bf16.mxu0 0
    %140 = vmatpush1.bf16.msra.mxu0 0
    %141 = vmatprep.subr.bf16.mxu0 0
    %142 = vmatpush1.bf16.msra.mxu0 0
    %143 = vmatprep.subr.bf16.mxu0 0
    %144 = vmatpush1.bf16.msra.mxu0 0
    %145 = vmatprep.subr.bf16.mxu0 0
    %146 = vmatpush1.bf16.msra.mxu0 0
    %147 = vmatprep.subr.bf16.mxu0 0
    %148 = vmatpush1.bf16.msra.mxu0 0
    %149 = vmatprep.subr.bf16.mxu0 0
    %150 = vmatpush1.bf16.msra.mxu0 %v55
    %151 = vmatprep.subr.bf16.mxu0 0
    %152 = vmatpush1.bf16.msra.mxu0 %v54
    %153 = vmatprep.subr.bf16.mxu0 0
    %154 = vmatpush2.bf16.msra.mxu0 0
    %155 = vmatprep.subr.bf16.mxu0 0
    %156 = vmatpush2.bf16.msra.mxu0 0
    %157 = vmatprep.subr.bf16.mxu0 0
    %158 = vmatpush2.bf16.msra.mxu0 0
    %159 = vmatprep.subr.bf16.mxu0 0
    %160 = vmatpush2.bf16.msra.mxu0 0
    %161 = vmatprep.subr.bf16.mxu0 0
    %162 = vmatpush2.bf16.msra.mxu0 0
    %163 = vmatprep.subr.bf16.mxu0 0
    %164 = vmatpush2.bf16.msra.mxu0 0
    %165 = vmatprep.subr.bf16.mxu0 0
    %166 = vmatpush2.bf16.msra.mxu0 0
    %167 = vmatprep.subr.bf16.mxu0 0
    %168 = vmatpush2.bf16.msra.mxu0 0
    %169 = vmatprep.mubr.bf16.mxu0 0
    %170 = vmatmul.mubr.bf16.gmra.mxu0 %v135
    %v171 = vpop.f32.mrf.mxu0
    %v172 = vadd.f32 0.0, %v171
    %v173 = vpop.f32.mrf.mxu0
    %v174 = vpop.f32.mrf.mxu0
    %v175 = vpop.f32.mrf.mxu0
    %176 = vdwg.mxu0
    %v177 = vadd.f32 %v129, %v172
    %v178 = vxor.u32 %v177, 2147483648
    %v179 = vmul.f32 %v178, 1.442695
    %v180 = vpow.pop %v179
    %v181 = vadd.f32 %v180, 1.0
    %v182 = vrcp.pop %v181
    %v183 = vmul.f32 1.0, %v182
    %v184 = vmul.f32 %v183, 2.0
    %v185 = vsub.f32 %v184, 1.0
    %v186 = vmul.f32 %v183, %v121
    %188 = vrot.lane.b32.xlu0 %v185, 64
    %v189 = vpop.permute.xlu0 %188
    %v191 = vmul.f32 %v183, %v189
    %193 = vrot.lane.b32.xlu0 %v191, 32
    %v194 = vpop.permute.xlu0 %193
    %v196 = vadd.f32 %v186, %v194
    %v197 = vtanh.pop %v196
    %199 = vrot.lane.b32.xlu0 %v197, 64
    %v200 = vpop.permute.xlu0 %199
    %v202 = vmul.f32 %v183, %v200
    %s203 = scalar_lea.vmem [#allocation2], 16
    %v204 = vld [vmem:[%s203] sm:$0xff]
    %v205 = vpack.c.bf16 %v202, %v202
    %207 = vrot.lane.b32.xlu0 %v205, 32
    %v208 = vpop.permute.xlu0 %207
    %v210 = vsel %vm58, %v208, 0
    %212 = vmatprep.subr.bf16.mxu0 0
    %213 = vmatpush1.bf16.msra.mxu0 0
    %214 = vmatprep.subr.bf16.mxu0 0
    %215 = vmatpush1.bf16.msra.mxu0 0
    %216 = vmatprep.subr.bf16.mxu0 0
    %217 = vmatpush1.bf16.msra.mxu0 0
    %218 = vmatprep.subr.bf16.mxu0 0
    %219 = vmatpush1.bf16.msra.mxu0 0
    %220 = vmatprep.subr.bf16.mxu0 0
    %221 = vmatpush1.bf16.msra.mxu0 0
    %222 = vmatprep.subr.bf16.mxu0 0
    %223 = vmatpush1.bf16.msra.mxu0 0
    %224 = vmatprep.subr.bf16.mxu0 0
    %225 = vmatpush1.bf16.msra.mxu0 %v55
    %226 = vmatprep.subr.bf16.mxu0 0
    %227 = vmatpush1.bf16.msra.mxu0 %v54
    %228 = vmatprep.subr.bf16.mxu0 0
    %229 = vmatpush2.bf16.msra.mxu0 0
    %230 = vmatprep.subr.bf16.mxu0 0
    %231 = vmatpush2.bf16.msra.mxu0 0
    %232 = vmatprep.subr.bf16.mxu0 0
    %233 = vmatpush2.bf16.msra.mxu0 0
    %234 = vmatprep.subr.bf16.mxu0 0
    %235 = vmatpush2.bf16.msra.mxu0 0
    %236 = vmatprep.subr.bf16.mxu0 0
    %237 = vmatpush2.bf16.msra.mxu0 0
    %238 = vmatprep.subr.bf16.mxu0 0
    %239 = vmatpush2.bf16.msra.mxu0 0
    %240 = vmatprep.subr.bf16.mxu0 0
    %241 = vmatpush2.bf16.msra.mxu0 0
    %242 = vmatprep.subr.bf16.mxu0 0
    %243 = vmatpush2.bf16.msra.mxu0 0
    %244 = vmatprep.mubr.bf16.mxu0 0
    %245 = vmatmul.mubr.bf16.gmra.mxu0 %v210
    %v246 = vpop.f32.mrf.mxu0
    %v247 = vadd.f32 0.0, %v246
    %v248 = vpop.f32.mrf.mxu0
    %v249 = vpop.f32.mrf.mxu0
    %v250 = vpop.f32.mrf.mxu0
    %251 = vdwg.mxu0
    %v252 = vadd.f32 %v204, %v247
    %v253 = vxor.u32 %v252, 2147483648
    %v254 = vmul.f32 %v253, 1.442695
    %v255 = vpow.pop %v254
    %v256 = vadd.f32 %v255, 1.0
    %v257 = vrcp.pop %v256
    %v258 = vmul.f32 1.0, %v257
    %v259 = vmul.f32 %v258, 2.0
    %v260 = vsub.f32 %v259, 1.0
    %v261 = vmul.f32 %v258, %v196
    %263 = vrot.lane.b32.xlu0 %v260, 64
    %v264 = vpop.permute.xlu0 %263
    %v266 = vmul.f32 %v258, %v264
    %268 = vrot.lane.b32.xlu0 %v266, 32
    %v269 = vpop.permute.xlu0 %268
    %v271 = vadd.f32 %v261, %v269
    %v272 = vtanh.pop %v271
    %274 = vrot.lane.b32.xlu0 %v272, 64
    %v275 = vpop.permute.xlu0 %274
    %v277 = vmul.f32 %v258, %v275
    %s278 = scalar_lea.vmem [#allocation2], 24
    %v279 = vld [vmem:[%s278] sm:$0xff]
    %v280 = vpack.c.bf16 %v277, %v277
    %282 = vrot.lane.b32.xlu0 %v280, 32
    %v283 = vpop.permute.xlu0 %282
    %v285 = vsel %vm58, %v283, 0
    %287 = vmatprep.subr.bf16.mxu0 0
    %288 = vmatpush1.bf16.msra.mxu0 0
    %289 = vmatprep.subr.bf16.mxu0 0
    %290 = vmatpush1.bf16.msra.mxu0 0
    %291 = vmatprep.subr.bf16.mxu0 0
    %292 = vmatpush1.bf16.msra.mxu0 0
    %293 = vmatprep.subr.bf16.mxu0 0
    %294 = vmatpush1.bf16.msra.mxu0 0
    %295 = vmatprep.subr.bf16.mxu0 0
    %296 = vmatpush1.bf16.msra.mxu0 0
    %297 = vmatprep.subr.bf16.mxu0 0
    %298 = vmatpush1.bf16.msra.mxu0 0
    %299 = vmatprep.subr.bf16.mxu0 0
    %300 = vmatpush1.bf16.msra.mxu0 %v55
    %301 = vmatprep.subr.bf16.mxu0 0
    %302 = vmatpush1.bf16.msra.mxu0 %v54
    %303 = vmatprep.subr.bf16.mxu0 0
    %304 = vmatpush2.bf16.msra.mxu0 0
    %305 = vmatprep.subr.bf16.mxu0 0
    %306 = vmatpush2.bf16.msra.mxu0 0
    %307 = vmatprep.subr.bf16.mxu0 0
    %308 = vmatpush2.bf16.msra.mxu0 0
    %309 = vmatprep.subr.bf16.mxu0 0
    %310 = vmatpush2.bf16.msra.mxu0 0
    %311 = vmatprep.subr.bf16.mxu0 0
    %312 = vmatpush2.bf16.msra.mxu0 0
    %313 = vmatprep.subr.bf16.mxu0 0
    %314 = vmatpush2.bf16.msra.mxu0 0
    %315 = vmatprep.subr.bf16.mxu0 0
    %316 = vmatpush2.bf16.msra.mxu0 0
    %317 = vmatprep.subr.bf16.mxu0 0
    %318 = vmatpush2.bf16.msra.mxu0 0
    %319 = vmatprep.mubr.bf16.mxu0 0
    %320 = vmatmul.mubr.bf16.gmra.mxu0 %v285
    %v321 = vpop.f32.mrf.mxu0
    %v322 = vadd.f32 0.0, %v321
    %v323 = vpop.f32.mrf.mxu0
    %v324 = vpop.f32.mrf.mxu0
    %v325 = vpop.f32.mrf.mxu0
    %326 = vdwg.mxu0
    %v327 = vadd.f32 %v279, %v322
    %v328 = vxor.u32 %v327, 2147483648
    %v329 = vmul.f32 %v328, 1.442695
    %v330 = vpow.pop %v329
    %v331 = vadd.f32 %v330, 1.0
    %v332 = vrcp.pop %v331
    %v333 = vmul.f32 1.0, %v332
    %v334 = vmul.f32 %v333, 2.0
    %v335 = vsub.f32 %v334, 1.0
    %v336 = vmul.f32 %v333, %v271
    %338 = vrot.lane.b32.xlu0 %v335, 64
    %v339 = vpop.permute.xlu0 %338
    %v341 = vmul.f32 %v333, %v339
    %343 = vrot.lane.b32.xlu0 %v341, 32
    %v344 = vpop.permute.xlu0 %343
    %v346 = vadd.f32 %v336, %v344
    %v347 = vtanh.pop %v346
    %349 = vrot.lane.b32.xlu0 %v347, 64
    %v350 = vpop.permute.xlu0 %349
    %v352 = vmul.f32 %v333, %v350
    %s353 = scalar_lea.vmem [#allocation2], 32
    %v354 = vld [vmem:[%s353] sm:$0xff]
    %v355 = vpack.c.bf16 %v352, %v352
    %357 = vrot.lane.b32.xlu0 %v355, 32
    %v358 = vpop.permute.xlu0 %357
    %v360 = vsel %vm58, %v358, 0
    %362 = vmatprep.subr.bf16.mxu0 0
    %363 = vmatpush1.bf16.msra.mxu0 0
    %364 = vmatprep.subr.bf16.mxu0 0
    %365 = vmatpush1.bf16.msra.mxu0 0
    %366 = vmatprep.subr.bf16.mxu0 0
    %367 = vmatpush1.bf16.msra.mxu0 0
    %368 = vmatprep.subr.bf16.mxu0 0
    %369 = vmatpush1.bf16.msra.mxu0 0
    %370 = vmatprep.subr.bf16.mxu0 0
    %371 = vmatpush1.bf16.msra.mxu0 0
    %372 = vmatprep.subr.bf16.mxu0 0
    %373 = vmatpush1.bf16.msra.mxu0 0
    %374 = vmatprep.subr.bf16.mxu0 0
    %375 = vmatpush1.bf16.msra.mxu0 %v55
    %376 = vmatprep.subr.bf16.mxu0 0
    %377 = vmatpush1.bf16.msra.mxu0 %v54
    %378 = vmatprep.subr.bf16.mxu0 0
    %379 = vmatpush2.bf16.msra.mxu0 0
    %380 = vmatprep.subr.bf16.mxu0 0
    %381 = vmatpush2.bf16.msra.mxu0 0
    %382 = vmatprep.subr.bf16.mxu0 0
    %383 = vmatpush2.bf16.msra.mxu0 0
    %384 = vmatprep.subr.bf16.mxu0 0
    %385 = vmatpush2.bf16.msra.mxu0 0
    %386 = vmatprep.subr.bf16.mxu0 0
    %387 = vmatpush2.bf16.msra.mxu0 0
    %388 = vmatprep.subr.bf16.mxu0 0
    %389 = vmatpush2.bf16.msra.mxu0 0
    %390 = vmatprep.subr.bf16.mxu0 0
    %391 = vmatpush2.bf16.msra.mxu0 0
    %392 = vmatprep.subr.bf16.mxu0 0
    %393 = vmatpush2.bf16.msra.mxu0 0
    %394 = vmatprep.mubr.bf16.mxu0 0
    %395 = vmatmul.mubr.bf16.gmra.mxu0 %v360
    %v396 = vpop.f32.mrf.mxu0
    %v397 = vadd.f32 0.0, %v396
    %v398 = vpop.f32.mrf.mxu0
    %v399 = vpop.f32.mrf.mxu0
    %v400 = vpop.f32.mrf.mxu0
    %401 = vdwg.mxu0
    %v402 = vadd.f32 %v354, %v397
    %v403 = vxor.u32 %v402, 2147483648
    %v404 = vmul.f32 %v403, 1.442695
    %v405 = vpow.pop %v404
    %v406 = vadd.f32 %v405, 1.0
    %v407 = vrcp.pop %v406
    %v408 = vmul.f32 1.0, %v407
    %v409 = vmul.f32 %v408, 2.0
    %v410 = vsub.f32 %v409, 1.0
    %v411 = vmul.f32 %v408, %v346
    %413 = vrot.lane.b32.xlu0 %v410, 64
    %v414 = vpop.permute.xlu0 %413
    %v416 = vmul.f32 %v408, %v414
    %418 = vrot.lane.b32.xlu0 %v416, 32
    %v419 = vpop.permute.xlu0 %418
    %v421 = vadd.f32 %v411, %v419
    %v422 = vtanh.pop %v421
    %424 = vrot.lane.b32.xlu0 %v422, 64
    %v425 = vpop.permute.xlu0 %424
    %v427 = vmul.f32 %v408, %v425
    %s428 = scalar_lea.vmem [#allocation2], 40
    %v429 = vld [vmem:[%s428] sm:$0xff]
    %v430 = vpack.c.bf16 %v427, %v427
    %432 = vrot.lane.b32.xlu0 %v430, 32
    %v433 = vpop.permute.xlu0 %432
    %v435 = vsel %vm58, %v433, 0
    %437 = vmatprep.subr.bf16.mxu0 0
    %438 = vmatpush1.bf16.msra.mxu0 0
    %439 = vmatprep.subr.bf16.mxu0 0
    %440 = vmatpush1.bf16.msra.mxu0 0
    %441 = vmatprep.subr.bf16.mxu0 0
    %442 = vmatpush1.bf16.msra.mxu0 0
    %443 = vmatprep.subr.bf16.mxu0 0
    %444 = vmatpush1.bf16.msra.mxu0 0
    %445 = vmatprep.subr.bf16.mxu0 0
    %446 = vmatpush1.bf16.msra.mxu0 0
    %447 = vmatprep.subr.bf16.mxu0 0
    %448 = vmatpush1.bf16.msra.mxu0 0
    %449 = vmatprep.subr.bf16.mxu0 0
    %450 = vmatpush1.bf16.msra.mxu0 %v55
    %451 = vmatprep.subr.bf16.mxu0 0
    %452 = vmatpush1.bf16.msra.mxu0 %v54
    %453 = vmatprep.subr.bf16.mxu0 0
    %454 = vmatpush2.bf16.msra.mxu0 0
    %455 = vmatprep.subr.bf16.mxu0 0
    %456 = vmatpush2.bf16.msra.mxu0 0
    %457 = vmatprep.subr.bf16.mxu0 0
    %458 = vmatpush2.bf16.msra.mxu0 0
    %459 = vmatprep.subr.bf16.mxu0 0
    %460 = vmatpush2.bf16.msra.mxu0 0
    %461 = vmatprep.subr.bf16.mxu0 0
    %462 = vmatpush2.bf16.msra.mxu0 0
    %463 = vmatprep.subr.bf16.mxu0 0
    %464 = vmatpush2.bf16.msra.mxu0 0
    %465 = vmatprep.subr.bf16.mxu0 0
    %466 = vmatpush2.bf16.msra.mxu0 0
    %467 = vmatprep.subr.bf16.mxu0 0
    %468 = vmatpush2.bf16.msra.mxu0 0
    %469 = vmatprep.mubr.bf16.mxu0 0
    %470 = vmatmul.mubr.bf16.gmra.mxu0 %v435
    %v471 = vpop.f32.mrf.mxu0
    %v472 = vadd.f32 0.0, %v471
    %v473 = vpop.f32.mrf.mxu0
    %v474 = vpop.f32.mrf.mxu0
    %v475 = vpop.f32.mrf.mxu0
    %476 = vdwg.mxu0
    %v477 = vadd.f32 %v429, %v472
    %v478 = vxor.u32 %v477, 2147483648
    %v479 = vmul.f32 %v478, 1.442695
    %v480 = vpow.pop %v479
    %v481 = vadd.f32 %v480, 1.0
    %v482 = vrcp.pop %v481
    %v483 = vmul.f32 1.0, %v482
    %v484 = vmul.f32 %v483, 2.0
    %v485 = vsub.f32 %v484, 1.0
    %v486 = vmul.f32 %v483, %v421
    %488 = vrot.lane.b32.xlu0 %v485, 64
    %v489 = vpop.permute.xlu0 %488
    %v491 = vmul.f32 %v483, %v489
    %493 = vrot.lane.b32.xlu0 %v491, 32
    %v494 = vpop.permute.xlu0 %493
    %v496 = vadd.f32 %v486, %v494
    %v497 = vtanh.pop %v496
    %499 = vrot.lane.b32.xlu0 %v497, 64
    %v500 = vpop.permute.xlu0 %499
    %v502 = vmul.f32 %v483, %v500
    %s503 = scalar_lea.vmem [#allocation2], 48
    %v504 = vld [vmem:[%s503] sm:$0xff]
    %v505 = vpack.c.bf16 %v502, %v502
    %507 = vrot.lane.b32.xlu0 %v505, 32
    %v508 = vpop.permute.xlu0 %507
    %v510 = vsel %vm58, %v508, 0
    %512 = vmatprep.subr.bf16.mxu0 0
    %513 = vmatpush1.bf16.msra.mxu0 0
    %514 = vmatprep.subr.bf16.mxu0 0
    %515 = vmatpush1.bf16.msra.mxu0 0
    %516 = vmatprep.subr.bf16.mxu0 0
    %517 = vmatpush1.bf16.msra.mxu0 0
    %518 = vmatprep.subr.bf16.mxu0 0
    %519 = vmatpush1.bf16.msra.mxu0 0
    %520 = vmatprep.subr.bf16.mxu0 0
    %521 = vmatpush1.bf16.msra.mxu0 0
    %522 = vmatprep.subr.bf16.mxu0 0
    %523 = vmatpush1.bf16.msra.mxu0 0
    %524 = vmatprep.subr.bf16.mxu0 0
    %525 = vmatpush1.bf16.msra.mxu0 %v55
    %526 = vmatprep.subr.bf16.mxu0 0
    %527 = vmatpush1.bf16.msra.mxu0 %v54
    %528 = vmatprep.subr.bf16.mxu0 0
    %529 = vmatpush2.bf16.msra.mxu0 0
    %530 = vmatprep.subr.bf16.mxu0 0
    %531 = vmatpush2.bf16.msra.mxu0 0
    %532 = vmatprep.subr.bf16.mxu0 0
    %533 = vmatpush2.bf16.msra.mxu0 0
    %534 = vmatprep.subr.bf16.mxu0 0
    %535 = vmatpush2.bf16.msra.mxu0 0
    %536 = vmatprep.subr.bf16.mxu0 0
    %537 = vmatpush2.bf16.msra.mxu0 0
    %538 = vmatprep.subr.bf16.mxu0 0
    %539 = vmatpush2.bf16.msra.mxu0 0
    %540 = vmatprep.subr.bf16.mxu0 0
    %541 = vmatpush2.bf16.msra.mxu0 0
    %542 = vmatprep.subr.bf16.mxu0 0
    %543 = vmatpush2.bf16.msra.mxu0 0
    %544 = vmatprep.mubr.bf16.mxu0 0
    %545 = vmatmul.mubr.bf16.gmra.mxu0 %v510
    %v546 = vpop.f32.mrf.mxu0
    %v547 = vadd.f32 0.0, %v546
    %v548 = vpop.f32.mrf.mxu0
    %v549 = vpop.f32.mrf.mxu0
    %v550 = vpop.f32.mrf.mxu0
    %551 = vdwg.mxu0
    %v552 = vadd.f32 %v504, %v547
    %v553 = vxor.u32 %v552, 2147483648
    %v554 = vmul.f32 %v553, 1.442695
    %v555 = vpow.pop %v554
    %v556 = vadd.f32 %v555, 1.0
    %v557 = vrcp.pop %v556
    %v558 = vmul.f32 1.0, %v557
    %v559 = vmul.f32 %v558, 2.0
    %v560 = vsub.f32 %v559, 1.0
    %v561 = vmul.f32 %v558, %v496
    %563 = vrot.lane.b32.xlu0 %v560, 64
    %v564 = vpop.permute.xlu0 %563
    %v566 = vmul.f32 %v558, %v564
    %568 = vrot.lane.b32.xlu0 %v566, 32
    %v569 = vpop.permute.xlu0 %568
    %v571 = vadd.f32 %v561, %v569
    %v572 = vtanh.pop %v571
    %574 = vrot.lane.b32.xlu0 %v572, 64
    %v575 = vpop.permute.xlu0 %574
    %v577 = vmul.f32 %v558, %v575
    %s578 = scalar_lea.vmem [#allocation2], 56
    %v579 = vld [vmem:[%s578] sm:$0xff]
    %v580 = vpack.c.bf16 %v577, %v577
    %582 = vrot.lane.b32.xlu0 %v580, 32
    %v583 = vpop.permute.xlu0 %582
    %v585 = vsel %vm58, %v583, 0
    %587 = vmatprep.subr.bf16.mxu0 0
    %588 = vmatpush1.bf16.msra.mxu0 0
    %589 = vmatprep.subr.bf16.mxu0 0
    %590 = vmatpush1.bf16.msra.mxu0 0
    %591 = vmatprep.subr.bf16.mxu0 0
    %592 = vmatpush1.bf16.msra.mxu0 0
    %593 = vmatprep.subr.bf16.mxu0 0
    %594 = vmatpush1.bf16.msra.mxu0 0
    %595 = vmatprep.subr.bf16.mxu0 0
    %596 = vmatpush1.bf16.msra.mxu0 0
    %597 = vmatprep.subr.bf16.mxu0 0
    %598 = vmatpush1.bf16.msra.mxu0 0
    %599 = vmatprep.subr.bf16.mxu0 0
    %600 = vmatpush1.bf16.msra.mxu0 %v55
    %601 = vmatprep.subr.bf16.mxu0 0
    %602 = vmatpush1.bf16.msra.mxu0 %v54
    %603 = vmatprep.subr.bf16.mxu0 0
    %604 = vmatpush2.bf16.msra.mxu0 0
    %605 = vmatprep.subr.bf16.mxu0 0
    %606 = vmatpush2.bf16.msra.mxu0 0
    %607 = vmatprep.subr.bf16.mxu0 0
    %608 = vmatpush2.bf16.msra.mxu0 0
    %609 = vmatprep.subr.bf16.mxu0 0
    %610 = vmatpush2.bf16.msra.mxu0 0
    %611 = vmatprep.subr.bf16.mxu0 0
    %612 = vmatpush2.bf16.msra.mxu0 0
    %613 = vmatprep.subr.bf16.mxu0 0
    %614 = vmatpush2.bf16.msra.mxu0 0
    %615 = vmatprep.subr.bf16.mxu0 0
    %616 = vmatpush2.bf16.msra.mxu0 0
    %617 = vmatprep.subr.bf16.mxu0 0
    %618 = vmatpush2.bf16.msra.mxu0 0
    %619 = vmatprep.mubr.bf16.mxu0 0
    %620 = vmatmul.mubr.bf16.gmra.mxu0 %v585
    %v621 = vpop.f32.mrf.mxu0
    %v622 = vadd.f32 0.0, %v621
    %v623 = vpop.f32.mrf.mxu0
    %v624 = vpop.f32.mrf.mxu0
    %v625 = vpop.f32.mrf.mxu0
    %626 = vdwg.mxu0
    %v627 = vadd.f32 %v579, %v622
    %v628 = vxor.u32 %v627, 2147483648
    %v629 = vmul.f32 %v628, 1.442695
    %v630 = vpow.pop %v629
    %v631 = vadd.f32 %v630, 1.0
    %v632 = vrcp.pop %v631
    %v633 = vmul.f32 1.0, %v632
    %v634 = vmul.f32 %v633, 2.0
    %v635 = vsub.f32 %v634, 1.0
    %v636 = vmul.f32 %v633, %v571
    %638 = vrot.lane.b32.xlu0 %v635, 64
    %v639 = vpop.permute.xlu0 %638
    %v641 = vmul.f32 %v633, %v639
    %643 = vrot.lane.b32.xlu0 %v641, 32
    %v644 = vpop.permute.xlu0 %643
    %v646 = vadd.f32 %v636, %v644
    %v647 = vtanh.pop %v646
    %649 = vrot.lane.b32.xlu0 %v647, 64
    %v650 = vpop.permute.xlu0 %649
    %v652 = vmul.f32 %v633, %v650
    %654 = vrot.lane.b32.xlu0 %v652, 32
    %v655 = vpop.permute.xlu0 %654
    %657 = vst.msk [vmem:[#allocation7] sm:$0xff] %vm58, %v655
    // Predicated region
    $region18: #{tpu_custom_call.1} parent=1 // pred_check
      _
    $region19: #{tpu_custom_call.1} parent=1 // pred_check_branch
      %659 = sbr.rel (0) target = $region21
    $region20: #{tpu_custom_call.1} parent=1 // pred_region
      %s661 = ssub.s32 128, 128
      %662 = vsyncadd [#allocation4], %s661
      %s664 = sshll.u32 [#allocation7], 4
      %s665 = int_to_ptr.vmem [resolvable:$true] %s664
      %667 = dma.vmem_to_hbm [thread:$0]  %s665, 128, %s2, [#allocation4]
    $region21: #{tpu_custom_call.1} parent=1 // pred_fallthru
      _
    // Predicated region
    $region22: #{tpu_custom_call.1} parent=1 // pred_check
      _
    $region23: #{tpu_custom_call.1} parent=1 // pred_check_branch
      %669 = sbr.rel (0) target = $region25
    $region24: #{tpu_custom_call.1} parent=1 // pred_region
      %670 = dma.done [#allocation4], 128
    $region25: #{tpu_custom_call.1} parent=1 // pred_fallthru
      _
    %671 = vsyncpa [#allocation3], 1
    %672 = vsyncpa [#allocation6], 1
    %673 = vsyncpa [#allocation4], 1

</llo_original>
